<compile_context>
chip_gen: v7x
topology: tpu7x:2x2x1
jax: 0.10.0
libtpu: 0.0.40
codegen_flags: <defaults>
</compile_context>

<pallas_src>
import jax
import jax.numpy as jnp
from jax.experimental import pallas as pl
from jax.experimental.pallas import tpu as pltpu

LANES = 128            # TPU vreg lane width
SUBLANES = 8           # f32 sublane count
HIDDEN = 10
MAX_BLOCK_ROWS = 2048  # (2048, 128) f32 = 1 MiB per buffer
MIN_GRID_STEPS = 2     # >= 2 grid steps so v7x's 2nd TensorCore gets work


def _round_up(a, m):
    return ((a + m - 1) // m) * m


def sinenet_kernel(params_ref, x_ref, o_ref):
    # params_ref: SMEM f32[32], layout [0:10]=w1, [10:20]=b1, [20:30]=w2, [30]=b2
    # x_ref / o_ref: VMEM (block_rows, 128) f32
    x = x_ref[...]
    # j = 0 with b2 folded in (saves a zeros materialization + add per vreg).
    h = jnp.maximum(params_ref[0] * x + params_ref[HIDDEN], 0.0)
    y = params_ref[3 * HIDDEN] + params_ref[2 * HIDDEN] * h
    for j in range(1, HIDDEN):                                 # unrolled, pure VPU
        h = jnp.maximum(params_ref[j] * x + params_ref[HIDDEN + j], 0.0)
        y = y + params_ref[2 * HIDDEN + j] * h
    o_ref[...] = y


def sinenet_forward(x, w1, b1, w2, b2):
    """x: (N, 1) f32. Weights stored (in, out): w1 (1,10), b1 (1,10),
    w2 (10,1), b2 (1,1). Returns (N, 1) f32 (same math as the PyTorch module)."""
    n = x.shape[0]
    xf = x.reshape(-1).astype(jnp.float32)

    # Lane-dense layout: N -> (rows_padded, 128). Block is as large as allowed
    # (up to 1 MiB/buffer) but capped so there are >= MIN_GRID_STEPS grid steps
    # whenever the input spans more than one block.
    rows = _round_up(max(pl.cdiv(n, LANES), SUBLANES), SUBLANES)
    block_rows = min(MAX_BLOCK_ROWS,
                     _round_up(pl.cdiv(rows, MIN_GRID_STEPS), SUBLANES))
    block_rows = max(block_rows, SUBLANES)
    rows_padded = _round_up(rows, block_rows)
    n_padded = rows_padded * LANES

    aligned = (n_padded == n)
    if aligned:
        x2 = xf.reshape(rows_padded, LANES)          # no extra padded HBM copy
    else:
        # TODO(synk): for very large unaligned N, handle the ragged tail
        # in-kernel (manual DMA + masked store) to also drop this pad copy.
        x2 = jnp.pad(xf, (0, n_padded - n)).reshape(rows_padded, LANES)

    # Pack all 31 parameters into one f32[32] SMEM-prefetched array.
    params = jnp.concatenate([
        w1.reshape(-1), b1.reshape(-1), w2.reshape(-1), b2.reshape(-1),
    ]).astype(jnp.float32)
    params = jnp.pad(params, (0, 32 - params.shape[0]))

    grid = (rows_padded // block_rows,)
    out2 = pl.pallas_call(
        sinenet_kernel,
        out_shape=jax.ShapeDtypeStruct((rows_padded, LANES), jnp.float32),
        grid_spec=pltpu.PrefetchScalarGridSpec(
            num_scalar_prefetch=1,
            grid=grid,
            in_specs=[pl.BlockSpec((block_rows, LANES), lambda i, p: (i, 0))],
            out_specs=pl.BlockSpec((block_rows, LANES), lambda i, p: (i, 0)),
        ),
        compiler_params=pltpu.CompilerParams(
            dimension_semantics=("parallel",),
            vmem_limit_bytes=32 * 1024 * 1024,
        ),
        cost_estimate=pl.CostEstimate(
            flops=50 * n_padded,            # ~50 VALU ops per element
            transcendentals=0,
            bytes_accessed=8 * n_padded + 4 * 32,
        ),
    )(params, x2)

    if aligned:
        return out2.reshape(n, 1)
    return out2.reshape(-1)[:n].reshape(n, 1)


def init_params(key):
    """Parameter shapes matching the PyTorch module, stored (in, out) for the
    kernel/reference (x @ W + b == PyTorch x @ W.T + b). Uniform(-1/sqrt(fan_in))."""
    k1, k2, k3, k4 = jax.random.split(key, 4)
    bound1 = 1.0 / jnp.sqrt(1.0)   # fan_in = 1
    bound2 = 1.0 / jnp.sqrt(10.0)  # fan_in = 10
    w1 = jax.random.uniform(k1, (1, 10), jnp.float32, -bound1, bound1)
    b1 = jax.random.uniform(k2, (1, 10), jnp.float32, -bound1, bound1)
    w2 = jax.random.uniform(k3, (10, 1), jnp.float32, -bound2, bound2)
    b2 = jax.random.uniform(k4, (1, 1), jnp.float32, -bound2, bound2)
    return w1, b1, w2, b2


if __name__ == "__main__":
    key = jax.random.PRNGKey(0)
    k_x, k_p = jax.random.split(key)

    batch = 8
    x = jax.random.uniform(k_x, (batch, 1), jnp.float32, -jnp.pi, jnp.pi)
    w1, b1, w2, b2 = init_params(k_p)

    out = jax.block_until_ready(sinenet_forward(x, w1, b1, w2, b2))

    # Reference in plain JAX (same math as the PyTorch forward).
    ref = jnp.maximum(x @ w1 + b1, 0.0) @ w2 + b2
    assert out.shape == (batch, 1)
    assert jnp.allclose(out, ref, atol=1e-5, rtol=1e-5)

    # Sanity-check a larger, multi-block, unaligned batch against the reference.
    big_n = 3000
    xb = jax.random.uniform(jax.random.PRNGKey(1), (big_n, 1), jnp.float32,
                            -jnp.pi, jnp.pi)
    out_b = jax.block_until_ready(sinenet_forward(xb, w1, b1, w2, b2))
    ref_b = jnp.maximum(xb @ w1 + b1, 0.0) @ w2 + b2
    assert out_b.shape == (big_n, 1)
    assert jnp.allclose(out_b, ref_b, atol=1e-5, rtol=1e-5)

    print("KERNEL_OK")
</pallas_src>

<mosaic_0001>
module attributes {stable_mosaic.version = 11 : i64} {
  func.func @sinenet_kernel(%arg0: i32, %arg1: memref<32xf32, #tpu.memory_space<smem>>, %arg2: memref<8x128xf32, #tpu.memory_space<vmem>>, %arg3: memref<8x128xf32, #tpu.memory_space<vmem>>) attributes {dimension_semantics = [#tpu.dimension_semantics<parallel>], iteration_bounds = array<i64: 1>, scalar_prefetch = 1 : i64, scratch_operands = 0 : i64, tpu.core_type = #tpu.core_type<tc>, window_params = [{transform_indices = @transform_0, window_bounds = array<i64: 8, 128>}, {transform_indices = @transform_1, window_bounds = array<i64: 8, 128>}]} {
    %c0 = arith.constant 0 : index
    %c0_0 = arith.constant 0 : index
    %0 = vector.load %arg2[%c0, %c0_0] : memref<8x128xf32, #tpu.memory_space<vmem>>, vector<8x128xf32>
    %c0_1 = arith.constant 0 : index
    %1 = memref.load %arg1[%c0_1] : memref<32xf32, #tpu.memory_space<smem>>
    %2 = vector.broadcast %1 : f32 to vector<8x128xf32>
    %3 = arith.mulf %2, %0 : vector<8x128xf32>
    %c10 = arith.constant 10 : index
    %4 = memref.load %arg1[%c10] : memref<32xf32, #tpu.memory_space<smem>>
    %5 = vector.broadcast %4 : f32 to vector<8x128xf32>
    %6 = arith.addf %3, %5 : vector<8x128xf32>
    %cst = arith.constant 0.000000e+00 : f32
    %7 = vector.broadcast %cst : f32 to vector<8x128xf32>
    %8 = arith.maximumf %6, %7 : vector<8x128xf32>
    %c30 = arith.constant 30 : index
    %9 = memref.load %arg1[%c30] : memref<32xf32, #tpu.memory_space<smem>>
    %c20 = arith.constant 20 : index
    %10 = memref.load %arg1[%c20] : memref<32xf32, #tpu.memory_space<smem>>
    %11 = vector.broadcast %10 : f32 to vector<8x128xf32>
    %12 = arith.mulf %11, %8 : vector<8x128xf32>
    %13 = vector.broadcast %9 : f32 to vector<8x128xf32>
    %14 = arith.addf %13, %12 : vector<8x128xf32>
    %c1 = arith.constant 1 : index
    %15 = memref.load %arg1[%c1] : memref<32xf32, #tpu.memory_space<smem>>
    %16 = vector.broadcast %15 : f32 to vector<8x128xf32>
    %17 = arith.mulf %16, %0 : vector<8x128xf32>
    %c11 = arith.constant 11 : index
    %18 = memref.load %arg1[%c11] : memref<32xf32, #tpu.memory_space<smem>>
    %19 = vector.broadcast %18 : f32 to vector<8x128xf32>
    %20 = arith.addf %17, %19 : vector<8x128xf32>
    %cst_2 = arith.constant 0.000000e+00 : f32
    %21 = vector.broadcast %cst_2 : f32 to vector<8x128xf32>
    %22 = arith.maximumf %20, %21 : vector<8x128xf32>
    %c21 = arith.constant 21 : index
    %23 = memref.load %arg1[%c21] : memref<32xf32, #tpu.memory_space<smem>>
    %24 = vector.broadcast %23 : f32 to vector<8x128xf32>
    %25 = arith.mulf %24, %22 : vector<8x128xf32>
    %26 = arith.addf %14, %25 : vector<8x128xf32>
    %c2 = arith.constant 2 : index
    %27 = memref.load %arg1[%c2] : memref<32xf32, #tpu.memory_space<smem>>
    %28 = vector.broadcast %27 : f32 to vector<8x128xf32>
    %29 = arith.mulf %28, %0 : vector<8x128xf32>
    %c12 = arith.constant 12 : index
    %30 = memref.load %arg1[%c12] : memref<32xf32, #tpu.memory_space<smem>>
    %31 = vector.broadcast %30 : f32 to vector<8x128xf32>
    %32 = arith.addf %29, %31 : vector<8x128xf32>
    %cst_3 = arith.constant 0.000000e+00 : f32
    %33 = vector.broadcast %cst_3 : f32 to vector<8x128xf32>
    %34 = arith.maximumf %32, %33 : vector<8x128xf32>
    %c22 = arith.constant 22 : index
    %35 = memref.load %arg1[%c22] : memref<32xf32, #tpu.memory_space<smem>>
    %36 = vector.broadcast %35 : f32 to vector<8x128xf32>
    %37 = arith.mulf %36, %34 : vector<8x128xf32>
    %38 = arith.addf %26, %37 : vector<8x128xf32>
    %c3 = arith.constant 3 : index
    %39 = memref.load %arg1[%c3] : memref<32xf32, #tpu.memory_space<smem>>
    %40 = vector.broadcast %39 : f32 to vector<8x128xf32>
    %41 = arith.mulf %40, %0 : vector<8x128xf32>
    %c13 = arith.constant 13 : index
    %42 = memref.load %arg1[%c13] : memref<32xf32, #tpu.memory_space<smem>>
    %43 = vector.broadcast %42 : f32 to vector<8x128xf32>
    %44 = arith.addf %41, %43 : vector<8x128xf32>
    %cst_4 = arith.constant 0.000000e+00 : f32
    %45 = vector.broadcast %cst_4 : f32 to vector<8x128xf32>
    %46 = arith.maximumf %44, %45 : vector<8x128xf32>
    %c23 = arith.constant 23 : index
    %47 = memref.load %arg1[%c23] : memref<32xf32, #tpu.memory_space<smem>>
    %48 = vector.broadcast %47 : f32 to vector<8x128xf32>
    %49 = arith.mulf %48, %46 : vector<8x128xf32>
    %50 = arith.addf %38, %49 : vector<8x128xf32>
    %c4 = arith.constant 4 : index
    %51 = memref.load %arg1[%c4] : memref<32xf32, #tpu.memory_space<smem>>
    %52 = vector.broadcast %51 : f32 to vector<8x128xf32>
    %53 = arith.mulf %52, %0 : vector<8x128xf32>
    %c14 = arith.constant 14 : index
    %54 = memref.load %arg1[%c14] : memref<32xf32, #tpu.memory_space<smem>>
    %55 = vector.broadcast %54 : f32 to vector<8x128xf32>
    %56 = arith.addf %53, %55 : vector<8x128xf32>
    %cst_5 = arith.constant 0.000000e+00 : f32
    %57 = vector.broadcast %cst_5 : f32 to vector<8x128xf32>
    %58 = arith.maximumf %56, %57 : vector<8x128xf32>
    %c24 = arith.constant 24 : index
    %59 = memref.load %arg1[%c24] : memref<32xf32, #tpu.memory_space<smem>>
    %60 = vector.broadcast %59 : f32 to vector<8x128xf32>
    %61 = arith.mulf %60, %58 : vector<8x128xf32>
    %62 = arith.addf %50, %61 : vector<8x128xf32>
    %c5 = arith.constant 5 : index
    %63 = memref.load %arg1[%c5] : memref<32xf32, #tpu.memory_space<smem>>
    %64 = vector.broadcast %63 : f32 to vector<8x128xf32>
    %65 = arith.mulf %64, %0 : vector<8x128xf32>
    %c15 = arith.constant 15 : index
    %66 = memref.load %arg1[%c15] : memref<32xf32, #tpu.memory_space<smem>>
    %67 = vector.broadcast %66 : f32 to vector<8x128xf32>
    %68 = arith.addf %65, %67 : vector<8x128xf32>
    %cst_6 = arith.constant 0.000000e+00 : f32
    %69 = vector.broadcast %cst_6 : f32 to vector<8x128xf32>
    %70 = arith.maximumf %68, %69 : vector<8x128xf32>
    %c25 = arith.constant 25 : index
    %71 = memref.load %arg1[%c25] : memref<32xf32, #tpu.memory_space<smem>>
    %72 = vector.broadcast %71 : f32 to vector<8x128xf32>
    %73 = arith.mulf %72, %70 : vector<8x128xf32>
    %74 = arith.addf %62, %73 : vector<8x128xf32>
    %c6 = arith.constant 6 : index
    %75 = memref.load %arg1[%c6] : memref<32xf32, #tpu.memory_space<smem>>
    %76 = vector.broadcast %75 : f32 to vector<8x128xf32>
    %77 = arith.mulf %76, %0 : vector<8x128xf32>
    %c16 = arith.constant 16 : index
    %78 = memref.load %arg1[%c16] : memref<32xf32, #tpu.memory_space<smem>>
    %79 = vector.broadcast %78 : f32 to vector<8x128xf32>
    %80 = arith.addf %77, %79 : vector<8x128xf32>
    %cst_7 = arith.constant 0.000000e+00 : f32
    %81 = vector.broadcast %cst_7 : f32 to vector<8x128xf32>
    %82 = arith.maximumf %80, %81 : vector<8x128xf32>
    %c26 = arith.constant 26 : index
    %83 = memref.load %arg1[%c26] : memref<32xf32, #tpu.memory_space<smem>>
    %84 = vector.broadcast %83 : f32 to vector<8x128xf32>
    %85 = arith.mulf %84, %82 : vector<8x128xf32>
    %86 = arith.addf %74, %85 : vector<8x128xf32>
    %c7 = arith.constant 7 : index
    %87 = memref.load %arg1[%c7] : memref<32xf32, #tpu.memory_space<smem>>
    %88 = vector.broadcast %87 : f32 to vector<8x128xf32>
    %89 = arith.mulf %88, %0 : vector<8x128xf32>
    %c17 = arith.constant 17 : index
    %90 = memref.load %arg1[%c17] : memref<32xf32, #tpu.memory_space<smem>>
    %91 = vector.broadcast %90 : f32 to vector<8x128xf32>
    %92 = arith.addf %89, %91 : vector<8x128xf32>
    %cst_8 = arith.constant 0.000000e+00 : f32
    %93 = vector.broadcast %cst_8 : f32 to vector<8x128xf32>
    %94 = arith.maximumf %92, %93 : vector<8x128xf32>
    %c27 = arith.constant 27 : index
    %95 = memref.load %arg1[%c27] : memref<32xf32, #tpu.memory_space<smem>>
    %96 = vector.broadcast %95 : f32 to vector<8x128xf32>
    %97 = arith.mulf %96, %94 : vector<8x128xf32>
    %98 = arith.addf %86, %97 : vector<8x128xf32>
    %c8 = arith.constant 8 : index
    %99 = memref.load %arg1[%c8] : memref<32xf32, #tpu.memory_space<smem>>
    %100 = vector.broadcast %99 : f32 to vector<8x128xf32>
    %101 = arith.mulf %100, %0 : vector<8x128xf32>
    %c18 = arith.constant 18 : index
    %102 = memref.load %arg1[%c18] : memref<32xf32, #tpu.memory_space<smem>>
    %103 = vector.broadcast %102 : f32 to vector<8x128xf32>
    %104 = arith.addf %101, %103 : vector<8x128xf32>
    %cst_9 = arith.constant 0.000000e+00 : f32
    %105 = vector.broadcast %cst_9 : f32 to vector<8x128xf32>
    %106 = arith.maximumf %104, %105 : vector<8x128xf32>
    %c28 = arith.constant 28 : index
    %107 = memref.load %arg1[%c28] : memref<32xf32, #tpu.memory_space<smem>>
    %108 = vector.broadcast %107 : f32 to vector<8x128xf32>
    %109 = arith.mulf %108, %106 : vector<8x128xf32>
    %110 = arith.addf %98, %109 : vector<8x128xf32>
    %c9 = arith.constant 9 : index
    %111 = memref.load %arg1[%c9] : memref<32xf32, #tpu.memory_space<smem>>
    %112 = vector.broadcast %111 : f32 to vector<8x128xf32>
    %113 = arith.mulf %112, %0 : vector<8x128xf32>
    %c19 = arith.constant 19 : index
    %114 = memref.load %arg1[%c19] : memref<32xf32, #tpu.memory_space<smem>>
    %115 = vector.broadcast %114 : f32 to vector<8x128xf32>
    %116 = arith.addf %113, %115 : vector<8x128xf32>
    %cst_10 = arith.constant 0.000000e+00 : f32
    %117 = vector.broadcast %cst_10 : f32 to vector<8x128xf32>
    %118 = arith.maximumf %116, %117 : vector<8x128xf32>
    %c29 = arith.constant 29 : index
    %119 = memref.load %arg1[%c29] : memref<32xf32, #tpu.memory_space<smem>>
    %120 = vector.broadcast %119 : f32 to vector<8x128xf32>
    %121 = arith.mulf %120, %118 : vector<8x128xf32>
    %122 = arith.addf %110, %121 : vector<8x128xf32>
    %c0_11 = arith.constant 0 : index
    %c0_12 = arith.constant 0 : index
    %123 = vector.load %arg3[%c0_11, %c0_12] : memref<8x128xf32, #tpu.memory_space<vmem>>, vector<8x128xf32>
    tpu.vector_store %arg3[%c0_11, %c0_12], %122 {strides = array<i32>} : memref<8x128xf32, #tpu.memory_space<vmem>>, vector<8x128xf32>,
    return
  }
  func.func @transform_0(%arg0: i32, %arg1: memref<32xf32, #tpu.memory_space<smem>>) -> (i32, i32) {
    %c0_i32 = arith.constant 0 : i32
    %c0_i32_0 = arith.constant 0 : i32
    return %arg0, %c0_i32 : i32, i32
  }
  func.func @transform_1(%arg0: i32, %arg1: memref<32xf32, #tpu.memory_space<smem>>) -> (i32, i32) {
    %c0_i32 = arith.constant 0 : i32
    %c0_i32_0 = arith.constant 0 : i32
    return %arg0, %c0_i32 : i32, i32
  }
}

</mosaic_0001>

<llo_original>
// kernel: tpu_custom_call.1
$region0: #{tpu_custom_call.1}
  #allocation0 [shape = 'u32[]', space=smem, size = 0x4, offset = 0x4, fixed_abs, tag = 'smem constant byte address 0x4 - core index']
  #allocation1 [shape = 'u32[144,128]{1,0:T(1,128)}', space=vmem, size = 0x12000, scoped, tag = 'internal scratch']
  #allocation2 [shape = 's32[1]{0}', space=sflag, size = 0x4, scoped, tag = 'scoped memory for tpu_custom_call.1']
  #allocation3 [shape = 'u8[512]{0}', space=smem, size = 0x200, scoped, tag = 'prefetched SMEM operand 0']
  %s0 = inlined_call_operand.hbm [shape: f32[32], index: 0, kind: input, shape index: {}]
  %s1 = inlined_call_operand.hbm [shape: f32[8,128], index: 1, kind: input, shape index: {}]
  %s2 = inlined_call_operand.hbm [shape: f32[8,128], index: 2, kind: output, shape index: {}]
  %s3 = sld [smem:[#allocation0]]
  $region18: #{tpu_custom_call.1} parent=0
    _
  %s5 = ssub.s32 1, %s3
  %s6 = scalar_select 0, %s5, %s3
  %8 = dma.hbm_to_smem %s0, 16, [#allocation3], [#allocation2]
  %9 = dma.done [#allocation2], 16
  %10 = sfence
  $region1: #{tpu_custom_call.1} parent=0
    #allocation4 [shape = 'u8[4096]{0}', space=vmem, size = 0x1000, scoped, tag = 'input window, operand 1, single buffered']
    #allocation5 [shape = 's32[1]{0}', space=sflag, size = 0x4, scoped, tag = 'scoped memory for tpu_custom_call.1']
    #allocation6 [shape = 's32[1]{0}', space=sflag, size = 0x4, scoped, tag = 'scoped memory for tpu_custom_call.1']
    #allocation7 [shape = 'u8[4096]{0}', space=vmem, size = 0x1000, scoped, tag = 'output window, operand 0, single buffered']
    %11 = vsyncpa [#allocation5], 0
    %12 = vsyncpa [#allocation6], 0
    // Predicated region
    $region2: #{tpu_custom_call.1} parent=1 // pred_check
      _
    $region3: #{tpu_custom_call.1} parent=1 // pred_check_branch
      %14 = sbr.rel (0) target = $region5
    $region4: #{tpu_custom_call.1} parent=1 // pred_region
      %s16 = ssub.s32 128, 128
      %17 = vsyncadd [#allocation5], %s16
      %s19 = sshll.u32 [#allocation4], 4
      %s20 = int_to_ptr.vmem [resolvable:$true] %s19
      %22 = dma.hbm_to_vmem [thread:$0]  %s1, 128, %s20, [#allocation5]
    $region5: #{tpu_custom_call.1} parent=1 // pred_fallthru
      _
    // Predicated region
    $region6: #{tpu_custom_call.1} parent=1 // pred_check
      _
    $region7: #{tpu_custom_call.1} parent=1 // pred_check_branch
      %24 = sbr.rel (0) target = $region9
    $region8: #{tpu_custom_call.1} parent=1 // pred_region
      %25 = dma.done [#allocation5], 128
    $region9: #{tpu_custom_call.1} parent=1 // pred_fallthru
      _
    %v26 = vld [vmem:[#allocation4] sm:$0xff]
    %s27 = sld [smem:[#allocation3]]
    %v28 = vstv %s27
    %v29 = vmul.f32 %v28, %v26
    %s30 = sld [smem:[#allocation3 + $0xa]]
    %v31 = vstv %s30
    %v32 = vadd.f32 %v29, %v31
    %v33 = vmax.f32 %v32, 0.0
    %s34 = sld [smem:[#allocation3 + $0x1e]]
    %s35 = sld [smem:[#allocation3 + $0x14]]
    %v36 = vstv %s35
    %v37 = vmul.f32 %v36, %v33
    %v38 = vstv %s34
    %v39 = vadd.f32 %v38, %v37
    %s40 = sld [smem:[#allocation3 + $0x1]]
    %v41 = vstv %s40
    %v42 = vmul.f32 %v41, %v26
    %s43 = sld [smem:[#allocation3 + $0xb]]
    %v44 = vstv %s43
    %v45 = vadd.f32 %v42, %v44
    %v46 = vmax.f32 %v45, 0.0
    %s47 = sld [smem:[#allocation3 + $0x15]]
    %v48 = vstv %s47
    %v49 = vmul.f32 %v48, %v46
    %v50 = vadd.f32 %v39, %v49
    %s51 = sld [smem:[#allocation3 + $0x2]]
    %v52 = vstv %s51
    %v53 = vmul.f32 %v52, %v26
    %s54 = sld [smem:[#allocation3 + $0xc]]
    %v55 = vstv %s54
    %v56 = vadd.f32 %v53, %v55
    %v57 = vmax.f32 %v56, 0.0
    %s58 = sld [smem:[#allocation3 + $0x16]]
    %v59 = vstv %s58
    %v60 = vmul.f32 %v59, %v57
    %v61 = vadd.f32 %v50, %v60
    %s62 = sld [smem:[#allocation3 + $0x3]]
    %v63 = vstv %s62
    %v64 = vmul.f32 %v63, %v26
    %s65 = sld [smem:[#allocation3 + $0xd]]
    %v66 = vstv %s65
    %v67 = vadd.f32 %v64, %v66
    %v68 = vmax.f32 %v67, 0.0
    %s69 = sld [smem:[#allocation3 + $0x17]]
    %v70 = vstv %s69
    %v71 = vmul.f32 %v70, %v68
    %v72 = vadd.f32 %v61, %v71
    %s73 = sld [smem:[#allocation3 + $0x4]]
    %v74 = vstv %s73
    %v75 = vmul.f32 %v74, %v26
    %s76 = sld [smem:[#allocation3 + $0xe]]
    %v77 = vstv %s76
    %v78 = vadd.f32 %v75, %v77
    %v79 = vmax.f32 %v78, 0.0
    %s80 = sld [smem:[#allocation3 + $0x18]]
    %v81 = vstv %s80
    %v82 = vmul.f32 %v81, %v79
    %v83 = vadd.f32 %v72, %v82
    %s84 = sld [smem:[#allocation3 + $0x5]]
    %v85 = vstv %s84
    %v86 = vmul.f32 %v85, %v26
    %s87 = sld [smem:[#allocation3 + $0xf]]
    %v88 = vstv %s87
    %v89 = vadd.f32 %v86, %v88
    %v90 = vmax.f32 %v89, 0.0
    %s91 = sld [smem:[#allocation3 + $0x19]]
    %v92 = vstv %s91
    %v93 = vmul.f32 %v92, %v90
    %v94 = vadd.f32 %v83, %v93
    %s95 = sld [smem:[#allocation3 + $0x6]]
    %v96 = vstv %s95
    %v97 = vmul.f32 %v96, %v26
    %s98 = sld [smem:[#allocation3 + $0x10]]
    %v99 = vstv %s98
    %v100 = vadd.f32 %v97, %v99
    %v101 = vmax.f32 %v100, 0.0
    %s102 = sld [smem:[#allocation3 + $0x1a]]
    %v103 = vstv %s102
    %v104 = vmul.f32 %v103, %v101
    %v105 = vadd.f32 %v94, %v104
    %s106 = sld [smem:[#allocation3 + $0x7]]
    %v107 = vstv %s106
    %v108 = vmul.f32 %v107, %v26
    %s109 = sld [smem:[#allocation3 + $0x11]]
    %v110 = vstv %s109
    %v111 = vadd.f32 %v108, %v110
    %v112 = vmax.f32 %v111, 0.0
    %s113 = sld [smem:[#allocation3 + $0x1b]]
    %v114 = vstv %s113
    %v115 = vmul.f32 %v114, %v112
    %v116 = vadd.f32 %v105, %v115
    %s117 = sld [smem:[#allocation3 + $0x8]]
    %v118 = vstv %s117
    %v119 = vmul.f32 %v118, %v26
    %s120 = sld [smem:[#allocation3 + $0x12]]
    %v121 = vstv %s120
    %v122 = vadd.f32 %v119, %v121
    %v123 = vmax.f32 %v122, 0.0
    %s124 = sld [smem:[#allocation3 + $0x1c]]
    %v125 = vstv %s124
    %v126 = vmul.f32 %v125, %v123
    %v127 = vadd.f32 %v116, %v126
    %s128 = sld [smem:[#allocation3 + $0x9]]
    %v129 = vstv %s128
    %v130 = vmul.f32 %v129, %v26
    %s131 = sld [smem:[#allocation3 + $0x13]]
    %v132 = vstv %s131
    %v133 = vadd.f32 %v130, %v132
    %v134 = vmax.f32 %v133, 0.0
    %s135 = sld [smem:[#allocation3 + $0x1d]]
    %v136 = vstv %s135
    %v137 = vmul.f32 %v136, %v134
    %v138 = vadd.f32 %v127, %v137
    %139 = vst [vmem:[#allocation7] sm:$0xff] %v138
    // Predicated region
    $region10: #{tpu_custom_call.1} parent=1 // pred_check
      _
    $region11: #{tpu_custom_call.1} parent=1 // pred_check_branch
      %141 = sbr.rel (0) target = $region13
    $region12: #{tpu_custom_call.1} parent=1 // pred_region
      %s143 = ssub.s32 128, 128
      %144 = vsyncadd [#allocation6], %s143
      %s146 = sshll.u32 [#allocation7], 4
      %s147 = int_to_ptr.vmem [resolvable:$true] %s146
      %149 = dma.vmem_to_hbm [thread:$0]  %s147, 128, %s2, [#allocation6]
    $region13: #{tpu_custom_call.1} parent=1 // pred_fallthru
      _
    // Predicated region
    $region14: #{tpu_custom_call.1} parent=1 // pred_check
      _
    $region15: #{tpu_custom_call.1} parent=1 // pred_check_branch
      %151 = sbr.rel (0) target = $region17
    $region16: #{tpu_custom_call.1} parent=1 // pred_region
      %152 = dma.done [#allocation6], 128
    $region17: #{tpu_custom_call.1} parent=1 // pred_fallthru
      _
    %153 = vsyncpa [#allocation5], 1
    %154 = vsyncpa [#allocation6], 1

</llo_original>
